<compile_context>
chip_gen: v6e
topology: v6e:2x2x1
jax: 0.10.0
libtpu: 0.0.40
codegen_flags: <defaults>
</compile_context>

<pallas_src>
import jax
import jax.numpy as jnp
from jax import lax
from jax.experimental import pallas as pl
from jax.experimental.pallas import tpu as pltpu

DROP_P = 0.4                            # nn.functional.dropout(p=0.4, training=True)
KEEP_SCALE = 1.0 / (1.0 - DROP_P)       # inverted-dropout scaling
DROP_THRESH = int(DROP_P * (1 << 23))   # integer-domain threshold on 23 random bits
NORM_EPS = 1e-12                        # torch F.normalize default eps
NORM_EPS2 = NORM_EPS * NORM_EPS         # clamp on sumsq == clamp on norm


def projecter_kernel(x_ref, bits_ref, w_ref, b_ref, out_ref):
    """Fused [chunk|query]: dropout -> block-diag matmul + bias -> per-half L2 norm."""
    x = x_ref[...].astype(jnp.float32)

    # --- dropout (p = 0.4), keep-test entirely in integer domain ---
    r = bits_ref[...] & jnp.uint32(0x7FFFFF)
    keep = r >= jnp.uint32(DROP_THRESH)
    x = jnp.where(keep, x * KEEP_SCALE, 0.0)

    # --- single MXU matmul over the fused slab (block-diagonal weight) + bias ---
    y = jnp.dot(x, w_ref[...], preferred_element_type=jnp.float32) + b_ref[...]

    # --- L2 normalize each half along the feature axis (rsqrt -> EUP) ---
    half = y.shape[-1] // 2
    c = y[:, :half]
    q = y[:, half:]
    c = c * lax.rsqrt(jnp.maximum(jnp.sum(c * c, axis=1, keepdims=True), NORM_EPS2))
    q = q * lax.rsqrt(jnp.maximum(jnp.sum(q * q, axis=1, keepdims=True), NORM_EPS2))

    # --- one lane-dense store of the fused result slab ---
    out_ref[...] = jnp.concatenate([c, q], axis=1)


@jax.jit
def projecter_forward(chunk, query, wc_t, bc, wq_t, bq, key):
    B, D = chunk.shape
    D2 = 2 * D

    # Fuse inputs / params: [c|q] @ blockdiag(Wc^T, Wq^T) + [bc|bq]
    x = jnp.concatenate([chunk, query], axis=1)                          # (B, 2D)
    zeros = jnp.zeros((D, D), wc_t.dtype)
    w = jnp.concatenate(
        [jnp.concatenate([wc_t, zeros], axis=1),
         jnp.concatenate([zeros, wq_t], axis=1)], axis=0)                # (2D, 2D)
    b = jnp.concatenate([bc, bq]).reshape(1, D2)                         # (1, 2D)

    # Dropout random bits generated outside the kernel (portable: pltpu.prng_* has
    # no interpret/CPU lowering). One draw covers both tensors in the fused layout.
    bits = jax.random.bits(key, (B, D2), dtype=jnp.uint32)

    bm = B if B <= 128 else 128          # batch tile (sublane aligned for large B)
    grid = (pl.cdiv(B, bm),)

    out = pl.pallas_call(
        projecter_kernel,
        out_shape=jax.ShapeDtypeStruct((B, D2), jnp.float32),
        grid=grid,
        in_specs=[
            pl.BlockSpec((bm, D2), lambda i: (i, 0)),    # fused activations
            pl.BlockSpec((bm, D2), lambda i: (i, 0)),    # dropout bits
            pl.BlockSpec((D2, D2), lambda i: (0, 0)),    # block-diagonal weight
            pl.BlockSpec((1, D2), lambda i: (0, 0)),     # fused bias
        ],
        out_specs=pl.BlockSpec((bm, D2), lambda i: (i, 0)),
        compiler_params=pltpu.CompilerParams(dimension_semantics=("parallel",)),
    )(x, bits, w, b)

    chunk_adapter = out[:, :D]
    query_adapter = out[:, D:]
    # Rows are unit-norm (norm == 1 >> cosine eps 1e-8), so torch's cosine_similarity
    # reduces exactly to a row-wise dot product of the normalized vectors.
    metric = jnp.sum(chunk_adapter * query_adapter, axis=1)
    return chunk_adapter, query_adapter, metric


def init_projecter_params(key, dim):
    """Matches Projecter.init_weights: W = I + sqrt(0.1)*N(0,1), b = sqrt(0.1)*N(0,1)."""
    k1, k2, k3, k4 = jax.random.split(key, 4)
    s = jnp.sqrt(jnp.asarray(0.1, jnp.float32))
    w_chunk = jnp.eye(dim, dtype=jnp.float32) + s * jax.random.normal(k1, (dim, dim), jnp.float32)
    w_query = jnp.eye(dim, dtype=jnp.float32) + s * jax.random.normal(k2, (dim, dim), jnp.float32)
    b_chunk = s * jax.random.normal(k3, (dim,), jnp.float32)
    b_query = s * jax.random.normal(k4, (dim,), jnp.float32)
    return w_chunk, b_chunk, w_query, b_query


if __name__ == "__main__":
    B, D = 8, 32  # small shapes: batch=8, in_dimension=32

    key = jax.random.PRNGKey(0)
    k_params, k_chunk, k_query, k_drop = jax.random.split(key, 4)

    w_chunk, b_chunk, w_query, b_query = init_projecter_params(k_params, D)
    chunk_batch = jax.random.normal(k_chunk, (B, D), jnp.float32)
    query_batch = jax.random.normal(k_query, (B, D), jnp.float32)

    # PyTorch Linear computes x @ W.T; pass pre-transposed weights to the kernel.
    wc_t = w_chunk.T
    wq_t = w_query.T

    chunk_adapter, query_adapter, metric = projecter_forward(
        chunk_batch, query_batch, wc_t, b_chunk, wq_t, b_query, k_drop
    )
    jax.block_until_ready((chunk_adapter, query_adapter, metric))

    assert chunk_adapter.shape == (B, D)
    assert query_adapter.shape == (B, D)
    assert metric.shape == (B,)
    # rows are unit-norm after normalize(dim=1)
    assert jnp.allclose(jnp.linalg.norm(chunk_adapter, axis=1), 1.0, atol=1e-4)
    assert jnp.allclose(jnp.linalg.norm(query_adapter, axis=1), 1.0, atol=1e-4)
    # cosine similarity of unit vectors lies in [-1, 1]
    assert bool(jnp.all(jnp.abs(metric) <= 1.0 + 1e-5))

    print("KERNEL_OK")
</pallas_src>

<mosaic_0001>
module attributes {stable_mosaic.version = 11 : i64} {
  func.func @projecter_kernel(%arg0: i32, %arg1: memref<8x64xf32, #tpu.memory_space<vmem>>, %arg2: memref<8x64xi32, #tpu.memory_space<vmem>>, %arg3: memref<64x64xf32, #tpu.memory_space<vmem>>, %arg4: memref<1x64xf32, #tpu.memory_space<vmem>>, %arg5: memref<8x64xf32, #tpu.memory_space<vmem>>) attributes {dimension_semantics = [#tpu.dimension_semantics<parallel>], iteration_bounds = array<i64: 1>, scalar_prefetch = 0 : i64, scratch_operands = 0 : i64, tpu.core_type = #tpu.core_type<tc>, window_params = [{transform_indices = @transform_0, window_bounds = array<i64: 8, 64>}, {transform_indices = @transform_1, window_bounds = array<i64: 8, 64>}, {pipeline_mode = #tpu.pipeline_mode<synchronous>, transform_indices = @transform_2, window_bounds = array<i64: 64, 64>}, {pipeline_mode = #tpu.pipeline_mode<synchronous>, transform_indices = @transform_3, window_bounds = array<i64: 1, 64>}, {transform_indices = @transform_4, window_bounds = array<i64: 8, 64>}]} {
    %c0 = arith.constant 0 : index
    %c0_0 = arith.constant 0 : index
    %0 = vector.load %arg1[%c0, %c0_0] : memref<8x64xf32, #tpu.memory_space<vmem>>, vector<8x64xf32>
    %c0_1 = arith.constant 0 : index
    %c0_2 = arith.constant 0 : index
    %1 = vector.load %arg2[%c0_1, %c0_2] : memref<8x64xi32, #tpu.memory_space<vmem>>, vector<8x64xi32>
    %c8388607_i32 = arith.constant 8388607 : i32
    %2 = vector.broadcast %c8388607_i32 : i32 to vector<8x64xi32>
    %3 = arith.andi %1, %2 : vector<8x64xi32>
    %c3355443_i32 = arith.constant 3355443 : i32
    %4 = vector.broadcast %c3355443_i32 : i32 to vector<8x64xi32>
    %5 = arith.cmpi uge, %3, %4 : vector<8x64xi32>
    %cst = arith.constant 1.66666663 : f32
    %6 = vector.broadcast %cst : f32 to vector<8x64xf32>
    %7 = arith.mulf %0, %6 : vector<8x64xf32>
    %cst_3 = arith.constant 0.000000e+00 : f32
    %8 = vector.broadcast %cst_3 : f32 to vector<8x64xf32>
    %9 = arith.select %5, %7, %8 : vector<8x64xi1>, vector<8x64xf32>
    %c0_4 = arith.constant 0 : index
    %c0_5 = arith.constant 0 : index
    %10 = vector.load %arg3[%c0_4, %c0_5] : memref<64x64xf32, #tpu.memory_space<vmem>>, vector<64x64xf32>
    %cst_6 = arith.constant dense<0.000000e+00> : vector<8x64xf32>
    %11 = tpu.matmul %9, %10, %cst_6 {dimension_numbers = #tpu.dot_dimension_numbers<[1], [0], [0], [1], [0, 0, 1, 1], [], []>} : vector<8x64xf32>, vector<64x64xf32>, vector<8x64xf32> -> vector<8x64xf32>
    %c0_7 = arith.constant 0 : index
    %c0_8 = arith.constant 0 : index
    %12 = vector.load %arg4[%c0_7, %c0_8] : memref<1x64xf32, #tpu.memory_space<vmem>>, vector<1x64xf32>
    %13 = vector.broadcast %12 : vector<1x64xf32> to vector<8x64xf32>
    %14 = arith.addf %11, %13 : vector<8x64xf32>
    %15 = vector.extract_strided_slice %14 {offsets = [0, 0], sizes = [8, 32], strides = [1, 1]} : vector<8x64xf32> to vector<8x32xf32>
    %16 = vector.extract_strided_slice %14 {offsets = [0, 32], sizes = [8, 32], strides = [1, 1]} : vector<8x64xf32> to vector<8x32xf32>
    %17 = arith.mulf %15, %15 : vector<8x32xf32>
    %cst_9 = arith.constant dense<0.000000e+00> : vector<8xf32>
    %18 = vector.multi_reduction <add>, %17, %cst_9 [1] : vector<8x32xf32> to vector<8xf32>
    %19 = vector.shape_cast %18 : vector<8xf32> to vector<8x1xf32>
    %cst_10 = arith.constant 1.000000e-24 : f32
    %20 = vector.broadcast %cst_10 : f32 to vector<8x1xf32>
    %21 = arith.maximumf %19, %20 : vector<8x1xf32>
    %22 = math.rsqrt %21 : vector<8x1xf32>
    %23 = vector.broadcast %22 : vector<8x1xf32> to vector<8x32xf32>
    %24 = arith.mulf %15, %23 : vector<8x32xf32>
    %25 = arith.mulf %16, %16 : vector<8x32xf32>
    %cst_11 = arith.constant dense<0.000000e+00> : vector<8xf32>
    %26 = vector.multi_reduction <add>, %25, %cst_11 [1] : vector<8x32xf32> to vector<8xf32>
    %27 = vector.shape_cast %26 : vector<8xf32> to vector<8x1xf32>
    %cst_12 = arith.constant 1.000000e-24 : f32
    %28 = vector.broadcast %cst_12 : f32 to vector<8x1xf32>
    %29 = arith.maximumf %27, %28 : vector<8x1xf32>
    %30 = math.rsqrt %29 : vector<8x1xf32>
    %31 = vector.broadcast %30 : vector<8x1xf32> to vector<8x32xf32>
    %32 = arith.mulf %16, %31 : vector<8x32xf32>
    %33 = tpu.concatenate %24, %32 in 1 : vector<8x32xf32>, vector<8x32xf32> -> vector<8x64xf32>
    %c0_13 = arith.constant 0 : index
    %c0_14 = arith.constant 0 : index
    %34 = vector.load %arg5[%c0_13, %c0_14] : memref<8x64xf32, #tpu.memory_space<vmem>>, vector<8x64xf32>
    tpu.vector_store %arg5[%c0_13, %c0_14], %33 {strides = array<i32>} : memref<8x64xf32, #tpu.memory_space<vmem>>, vector<8x64xf32>,
    return
  }
  func.func @transform_0(%arg0: i32) -> (i32, i32) {
    %c0_i32 = arith.constant 0 : i32
    %c0_i32_0 = arith.constant 0 : i32
    return %arg0, %c0_i32 : i32, i32
  }
  func.func @transform_1(%arg0: i32) -> (i32, i32) {
    %c0_i32 = arith.constant 0 : i32
    %c0_i32_0 = arith.constant 0 : i32
    return %arg0, %c0_i32 : i32, i32
  }
  func.func @transform_2(%arg0: i32) -> (i32, i32) {
    %c0_i32 = arith.constant 0 : i32
    %c0_i32_0 = arith.constant 0 : i32
    %c0_i32_1 = arith.constant 0 : i32
    return %c0_i32, %c0_i32_0 : i32, i32
  }
  func.func @transform_3(%arg0: i32) -> (i32, i32) {
    %c0_i32 = arith.constant 0 : i32
    %c0_i32_0 = arith.constant 0 : i32
    %c0_i32_1 = arith.constant 0 : i32
    return %c0_i32, %c0_i32_0 : i32, i32
  }
  func.func @transform_4(%arg0: i32) -> (i32, i32) {
    %c0_i32 = arith.constant 0 : i32
    %c0_i32_0 = arith.constant 0 : i32
    return %arg0, %c0_i32 : i32, i32
  }
}

</mosaic_0001>

<llo_original>
// kernel: projecter_forward.1
$region0: #{projecter_forward.1}
  #allocation0 [shape = 'u32[]', space=smem, size = 0x4, offset = 0x4, fixed_abs, tag = 'smem constant byte address 0x4 - core index']
  #allocation1 [shape = 'u32[144,128]{1,0:T(1,128)}', space=vmem, size = 0x12000, scoped, tag = 'internal scratch']
  %s0 = inlined_call_operand.vmem [shape: f32[8,64], index: 0, kind: input, shape index: {}]
  %s1 = inlined_call_operand.vmem [shape: u32[8,64], index: 1, kind: input, shape index: {}]
  %s2 = inlined_call_operand.vmem [shape: f32[64,64], index: 2, kind: input, shape index: {}]
  %s3 = inlined_call_operand.vmem [shape: f32[1,64], index: 3, kind: input, shape index: {}]
  %s4 = inlined_call_operand.vmem [shape: f32[8,64], index: 4, kind: output, shape index: {}]
  %s5 = sld [smem:[#allocation0]]
  $region26: #{projecter_forward.1} parent=0
    _
  %s7 = ssub.s32 1, %s5
  %s8 = scalar_select 0, %s7, %s5
  // Predicated region
  $region2: #{projecter_forward.1} parent=0 // pred_check
    _
  $region3: #{projecter_forward.1} parent=0 // pred_check_branch
    %10 = sbr.rel (0) target = $region5
  $region4: #{projecter_forward.1} parent=0 // pred_region
    _
  $region5: #{projecter_forward.1} parent=0 // pred_fallthru
    _
  // Predicated region
  $region6: #{projecter_forward.1} parent=0 // pred_check
    _
  $region7: #{projecter_forward.1} parent=0 // pred_check_branch
    %12 = sbr.rel (0) target = $region9
  $region8: #{projecter_forward.1} parent=0 // pred_region
    _
  $region9: #{projecter_forward.1} parent=0 // pred_fallthru
    _
  // Predicated region
  $region10: #{projecter_forward.1} parent=0 // pred_check
    _
  $region11: #{projecter_forward.1} parent=0 // pred_check_branch
    %14 = sbr.rel (0) target = $region13
  $region12: #{projecter_forward.1} parent=0 // pred_region
    _
  $region13: #{projecter_forward.1} parent=0 // pred_fallthru
    _
  // Predicated region
  $region14: #{projecter_forward.1} parent=0 // pred_check
    _
  $region15: #{projecter_forward.1} parent=0 // pred_check_branch
    %16 = sbr.rel (0) target = $region17
  $region16: #{projecter_forward.1} parent=0 // pred_region
    _
  $region17: #{projecter_forward.1} parent=0 // pred_fallthru
    _
  %v17 = vld [vmem:[%s0] sm:$0xff]
  %v18 = vld [vmem:[%s1] sm:$0xff]
  %v19 = vand.u32 %v18, 8388607
  %vm20 = vcmp.ge.u32.totalorder %v19, 3355443
  %v21 = vmul.f32 %v17, 1.6666666
  %v22 = vsel %vm20, %v21, 0.0
  %v23 = vld [vmem:[%s2] sm:$0xff]
  %v24 = vld [vmem:[%s2 + $0x8] sm:$0xff]
  %v25 = vld [vmem:[%s2 + $0x10] sm:$0xff]
  %v26 = vld [vmem:[%s2 + $0x18] sm:$0xff]
  %v27 = vld [vmem:[%s2 + $0x20] sm:$0xff]
  %v28 = vld [vmem:[%s2 + $0x28] sm:$0xff]
  %v29 = vld [vmem:[%s2 + $0x30] sm:$0xff]
  %v30 = vld [vmem:[%s2 + $0x38] sm:$0xff]
  %v31 = vld [vmem:[%s3] sm:$0x1]
  %v33 = vlaneseq
  %v34 = vshrl.u32 %v33, 7
  %v35 = vsub.s32 0, %v34
  %v36 = vrot.slane %v31, %v35
  %vm38 = vcmask 523264
  %v40 = vsel %vm38, %v22, 0
  %42 = vmatprep.subr.mxu0 0.0
  %43 = vmatpush1.msra.mxu0 0.0
  %44 = vmatprep.subr.mxu0 0.0
  %45 = vmatpush1.msra.mxu0 0.0
  %46 = vmatprep.subr.mxu0 0.0
  %47 = vmatpush1.msra.mxu0 0.0
  %48 = vmatprep.subr.mxu0 0.0
  %49 = vmatpush1.msra.mxu0 0.0
  %50 = vmatprep.subr.mxu0 0.0
  %51 = vmatpush1.msra.mxu0 0.0
  %52 = vmatprep.subr.mxu0 0.0
  %53 = vmatpush1.msra.mxu0 0.0
  %54 = vmatprep.subr.mxu0 0.0
  %55 = vmatpush1.msra.mxu0 0.0
  %56 = vmatprep.subr.mxu0 0.0
  %57 = vmatpush1.msra.mxu0 0.0
  %58 = vmatprep.subr.mxu0 0.0
  %59 = vmatpush1.msra.mxu0 %v30
  %60 = vmatprep.subr.mxu0 0.0
  %61 = vmatpush1.msra.mxu0 %v29
  %62 = vmatprep.subr.mxu0 0.0
  %63 = vmatpush1.msra.mxu0 %v28
  %64 = vmatprep.subr.mxu0 0.0
  %65 = vmatpush1.msra.mxu0 %v27
  %66 = vmatprep.subr.mxu0 0.0
  %67 = vmatpush1.msra.mxu0 %v26
  %68 = vmatprep.subr.mxu0 0.0
  %69 = vmatpush1.msra.mxu0 %v25
  %70 = vmatprep.subr.mxu0 0.0
  %71 = vmatpush1.msra.mxu0 %v24
  %72 = vmatprep.subr.mxu0 0.0
  %73 = vmatpush1.msra.mxu0 %v23
  %74 = vmatprep.subr.mxu0 0.0
  %75 = vmatpush2.msra.mxu0 0.0
  %76 = vmatprep.subr.mxu0 0.0
  %77 = vmatpush2.msra.mxu0 0.0
  %78 = vmatprep.subr.mxu0 0.0
  %79 = vmatpush2.msra.mxu0 0.0
  %80 = vmatprep.subr.mxu0 0.0
  %81 = vmatpush2.msra.mxu0 0.0
  %82 = vmatprep.subr.mxu0 0.0
  %83 = vmatpush2.msra.mxu0 0.0
  %84 = vmatprep.subr.mxu0 0.0
  %85 = vmatpush2.msra.mxu0 0.0
  %86 = vmatprep.subr.mxu0 0.0
  %87 = vmatpush2.msra.mxu0 0.0
  %88 = vmatprep.subr.mxu0 0.0
  %89 = vmatpush2.msra.mxu0 0.0
  %90 = vmatprep.subr.mxu0 0.0
  %91 = vmatpush2.msra.mxu0 0.0
  %92 = vmatprep.subr.mxu0 0.0
  %93 = vmatpush2.msra.mxu0 0.0
  %94 = vmatprep.subr.mxu0 0.0
  %95 = vmatpush2.msra.mxu0 0.0
  %96 = vmatprep.subr.mxu0 0.0
  %97 = vmatpush2.msra.mxu0 0.0
  %98 = vmatprep.subr.mxu0 0.0
  %99 = vmatpush2.msra.mxu0 0.0
  %100 = vmatprep.subr.mxu0 0.0
  %101 = vmatpush2.msra.mxu0 0.0
  %102 = vmatprep.subr.mxu0 0.0
  %103 = vmatpush2.msra.mxu0 0.0
  %104 = vmatprep.subr.mxu0 0.0
  %105 = vmatpush2.msra.mxu0 0.0
  %106 = vmatprep.mubr.f32.mxu0 0.0
  %107 = vmatmul.mubr.f32.gmra.mxu0 %v40
  %v108 = vpop.f32.mrf.mxu0
  %v109 = vadd.f32 %v36, %v108
  %v110 = vpop.f32.mrf.mxu0
  %111 = vdwg.mxu0
  %v112 = vmul.f32 %v109, %v109
  %vm113 = vcmask 261120
  %v114 = vsel %vm113, %v112, 0.0
  %115 = vadd.xlane.f32.xlu0 %v114
  %v116 = vpop.xlane.xlu0 %115
  %v117 = vmax.f32 %v116, 1e-24
  %v118 = vrsqrt.pop %v117
  %v119 = vmul.f32 %v109, %v118
  %121 = vrot.lane.b32.xlu0 %v112, 96
  %v122 = vpop.permute.xlu0 %121
  %v124 = vsel %vm113, %v122, 0.0
  %125 = vadd.xlane.f32.xlu0 %v124
  %v126 = vpop.xlane.xlu0 %125
  %v127 = vmax.f32 %v126, 1e-24
  %v128 = vrsqrt.pop %v127
  %v129 = vmul.f32 %v109, %v128
  %v130 = vsel %vm113, %v119, %v129
  %131 = vst.msk [vmem:[%s4] sm:$0xff] %vm38, %v130
  // Predicated region
  $region18: #{projecter_forward.1} parent=0 // pred_check
    _
  $region19: #{projecter_forward.1} parent=0 // pred_check_branch
    %133 = sbr.rel (0) target = $region21
  $region20: #{projecter_forward.1} parent=0 // pred_region
    _
  $region21: #{projecter_forward.1} parent=0 // pred_fallthru
    _
  // Predicated region
  $region22: #{projecter_forward.1} parent=0 // pred_check
    _
  $region23: #{projecter_forward.1} parent=0 // pred_check_branch
    %135 = sbr.rel (0) target = $region25
  $region24: #{projecter_forward.1} parent=0 // pred_region
    _
  $region25: #{projecter_forward.1} parent=0 // pred_fallthru
    _

</llo_original>
